<compile_context>
chip_gen: v6e
topology: v6e:2x2x1
jax: 0.10.0
libtpu: 0.0.40
codegen_flags: <defaults>
</compile_context>

<pallas_src>
import functools

import jax
import jax.numpy as jnp
import numpy as np
from jax.experimental import pallas as pl
from jax.experimental.pallas import tpu as pltpu


def _round_up(x, m):
    return ((x + m - 1) // m) * m


def product_layer_kernel(z_ref, se_ref, w_ref, b_ref, out_ref, *, field_num, embed_dim):
    F, E = field_num, embed_dim
    se = se_ref[...]                                   # [TM, F*E], lane-dense

    # Lane-dense field sum: f_sum[:, e] = sum_f se[:, f*E + e]  (pure VPU adds)
    f_sum = se[:, 0:E]
    for f in range(1, F):
        f_sum = f_sum + se[:, f * E:(f + 1) * E]

    # Lane-dense outer product: p_flat[:, i*E + j] = f_sum[:, i] * f_sum[:, j]
    p_cols = [f_sum[:, i:i + 1] * f_sum for i in range(E)]

    # Fused feature slab [TM, F*E + E*E]; single MXU matmul against fused weights.
    feats = jnp.concatenate([z_ref[...]] + p_cols, axis=1)
    out = jnp.dot(feats, w_ref[...], preferred_element_type=jnp.float32)
    out_ref[...] = (out + b_ref[...]).astype(out_ref.dtype)


def product_layer_forward(z, sparse_embeds, w_z, w_p, l_b, *, tile_m=256):
    B, F, E = z.shape
    H0 = w_z.shape[-1]
    FE, EE = F * E, E * E
    K = FE + EE

    # Flattening mirrors torch's permute/reshape/.T exactly.
    z_flat = z.reshape(B, FE).astype(jnp.float32)
    se_flat = sparse_embeds.reshape(B, FE).astype(jnp.float32)

    # Fused weights / bias, lane-padded so the output store is unmasked (H0 -> mult of 128).
    H0p = _round_up(H0, 128)
    w_fused = jnp.concatenate(
        [w_z.reshape(FE, H0), w_p.reshape(EE, H0)], axis=0).astype(jnp.float32)
    w_fused = jnp.pad(w_fused, ((0, 0), (0, H0p - H0)))
    b_pad = jnp.pad(l_b.reshape(1, H0).astype(jnp.float32), ((0, 0), (0, H0p - H0)))

    # Batch tiling: tile must be a multiple of 8; pad B up to a multiple of the tile.
    tm = min(tile_m, _round_up(B, 8))
    B_pad = _round_up(B, tm)
    if B_pad != B:
        z_flat = jnp.pad(z_flat, ((0, B_pad - B), (0, 0)))
        se_flat = jnp.pad(se_flat, ((0, B_pad - B), (0, 0)))

    grid = (B_pad // tm,)

    # VMEM budget: 2x double-buffered input tiles + resident weights/bias
    #              + double-buffered output tile + in-kernel feature slab.
    vmem_bytes = 4 * (2 * 2 * tm * FE + 2 * K * H0p + 2 * H0p + 2 * tm * H0p + 2 * tm * K)
    vmem_limit = int(min(max(2 * vmem_bytes, 8 * 2 ** 20), 48 * 2 ** 20))  # v7x-safe

    cost = pl.CostEstimate(
        flops=2 * B_pad * K * H0p,
        transcendentals=0,
        bytes_accessed=4 * (2 * B_pad * FE + K * H0p + H0p + B_pad * H0p),
    )

    kernel = functools.partial(product_layer_kernel, field_num=F, embed_dim=E)

    out = pl.pallas_call(
        kernel,
        out_shape=jax.ShapeDtypeStruct((B_pad, H0p), jnp.float32),
        grid=grid,
        in_specs=[
            pl.BlockSpec((tm, FE), lambda i: (i, 0)),    # z tile (streamed)
            pl.BlockSpec((tm, FE), lambda i: (i, 0)),    # sparse_embeds tile (streamed)
            pl.BlockSpec((K, H0p), lambda i: (0, 0)),    # fused weights (VMEM-resident)
            pl.BlockSpec((1, H0p), lambda i: (0, 0)),    # bias (VMEM-resident)
        ],
        out_specs=pl.BlockSpec((tm, H0p), lambda i: (i, 0)),
        compiler_params=pltpu.CompilerParams(
            dimension_semantics=("parallel",),
            vmem_limit_bytes=vmem_limit,
        ),
        cost_estimate=cost,
    )(z_flat, se_flat, w_fused, b_pad)

    return out[:B, :H0]


def product_layer_reference(z, sparse_embeds, w_z, w_p, l_b):
    B, F, E = z.shape
    H0 = w_z.shape[-1]
    l_z = z.reshape(B, F * E) @ w_z.reshape(F * E, H0)
    f_sum = jnp.sum(sparse_embeds, axis=1)
    p = f_sum[:, :, None] * f_sum[:, None, :]
    l_p = p.reshape(B, E * E) @ w_p.reshape(E * E, H0)
    return l_p + l_z + l_b[None, :]


if __name__ == "__main__":
    # Small, module-consistent shapes.
    batch = 2
    embed_dim = 8
    field_num = 4
    hidden_units = [32]
    H0 = hidden_units[0]

    key = jax.random.PRNGKey(0)
    k_z, k_se, k_wz, k_wp, k_b = jax.random.split(key, 5)

    # Deterministic parameter init: normal(0, 0.005), matching the module's init.
    w_z = 0.005 * jax.random.normal(k_wz, (field_num, embed_dim, H0), dtype=jnp.float32)
    w_p = 0.005 * jax.random.normal(k_wp, (embed_dim, embed_dim, H0), dtype=jnp.float32)
    l_b = 0.005 * jax.random.normal(k_b, (H0,), dtype=jnp.float32)

    # Inputs: z and sparse_embeds are both [B, field_num, embed_dim].
    z = jax.random.normal(k_z, (batch, field_num, embed_dim), dtype=jnp.float32)
    sparse_embeds = jax.random.normal(k_se, (batch, field_num, embed_dim), dtype=jnp.float32)

    out = product_layer_forward(z, sparse_embeds, w_z, w_p, l_b)
    out = jax.block_until_ready(out)
    ref = product_layer_reference(z, sparse_embeds, w_z, w_p, l_b)
    np.testing.assert_allclose(np.asarray(out), np.asarray(ref), rtol=1e-5, atol=1e-5)

    # Extra check exercising the batch grid + ragged-tail padding path.
    kb_z, kb_se = jax.random.split(jax.random.PRNGKey(1), 2)
    zb = jax.random.normal(kb_z, (37, field_num, embed_dim), dtype=jnp.float32)
    seb = jax.random.normal(kb_se, (37, field_num, embed_dim), dtype=jnp.float32)
    out_b = jax.block_until_ready(product_layer_forward(zb, seb, w_z, w_p, l_b, tile_m=16))
    ref_b = product_layer_reference(zb, seb, w_z, w_p, l_b)
    np.testing.assert_allclose(np.asarray(out_b), np.asarray(ref_b), rtol=1e-5, atol=1e-5)

    print("KERNEL_OK")
</pallas_src>

<mosaic_0001>
module attributes {stable_mosaic.version = 11 : i64} {
  func.func @product_layer_kernel(%arg0: i32, %arg1: memref<8x32xf32, #tpu.memory_space<vmem>>, %arg2: memref<8x32xf32, #tpu.memory_space<vmem>>, %arg3: memref<96x128xf32, #tpu.memory_space<vmem>>, %arg4: memref<1x128xf32, #tpu.memory_space<vmem>>, %arg5: memref<8x128xf32, #tpu.memory_space<vmem>>) attributes {dimension_semantics = [#tpu.dimension_semantics<parallel>], iteration_bounds = array<i64: 1>, scalar_prefetch = 0 : i64, scratch_operands = 0 : i64, tpu.core_type = #tpu.core_type<tc>, window_params = [{transform_indices = @transform_0, window_bounds = array<i64: 8, 32>}, {transform_indices = @transform_1, window_bounds = array<i64: 8, 32>}, {pipeline_mode = #tpu.pipeline_mode<synchronous>, transform_indices = @transform_2, window_bounds = array<i64: 96, 128>}, {pipeline_mode = #tpu.pipeline_mode<synchronous>, transform_indices = @transform_3, window_bounds = array<i64: 1, 128>}, {transform_indices = @transform_4, window_bounds = array<i64: 8, 128>}]} {
    %c0 = arith.constant 0 : index
    %c0_0 = arith.constant 0 : index
    %0 = vector.load %arg2[%c0, %c0_0] : memref<8x32xf32, #tpu.memory_space<vmem>>, vector<8x32xf32>
    %1 = vector.extract_strided_slice %0 {offsets = [0, 0], sizes = [8, 8], strides = [1, 1]} : vector<8x32xf32> to vector<8x8xf32>
    %2 = vector.extract_strided_slice %0 {offsets = [0, 8], sizes = [8, 8], strides = [1, 1]} : vector<8x32xf32> to vector<8x8xf32>
    %3 = arith.addf %1, %2 : vector<8x8xf32>
    %4 = vector.extract_strided_slice %0 {offsets = [0, 16], sizes = [8, 8], strides = [1, 1]} : vector<8x32xf32> to vector<8x8xf32>
    %5 = arith.addf %3, %4 : vector<8x8xf32>
    %6 = vector.extract_strided_slice %0 {offsets = [0, 24], sizes = [8, 8], strides = [1, 1]} : vector<8x32xf32> to vector<8x8xf32>
    %7 = arith.addf %5, %6 : vector<8x8xf32>
    %8 = vector.extract_strided_slice %7 {offsets = [0, 0], sizes = [8, 1], strides = [1, 1]} : vector<8x8xf32> to vector<8x1xf32>
    %9 = vector.broadcast %8 : vector<8x1xf32> to vector<8x8xf32>
    %10 = arith.mulf %9, %7 : vector<8x8xf32>
    %11 = vector.extract_strided_slice %7 {offsets = [0, 1], sizes = [8, 1], strides = [1, 1]} : vector<8x8xf32> to vector<8x1xf32>
    %12 = vector.broadcast %11 : vector<8x1xf32> to vector<8x8xf32>
    %13 = arith.mulf %12, %7 : vector<8x8xf32>
    %14 = vector.extract_strided_slice %7 {offsets = [0, 2], sizes = [8, 1], strides = [1, 1]} : vector<8x8xf32> to vector<8x1xf32>
    %15 = vector.broadcast %14 : vector<8x1xf32> to vector<8x8xf32>
    %16 = arith.mulf %15, %7 : vector<8x8xf32>
    %17 = vector.extract_strided_slice %7 {offsets = [0, 3], sizes = [8, 1], strides = [1, 1]} : vector<8x8xf32> to vector<8x1xf32>
    %18 = vector.broadcast %17 : vector<8x1xf32> to vector<8x8xf32>
    %19 = arith.mulf %18, %7 : vector<8x8xf32>
    %20 = vector.extract_strided_slice %7 {offsets = [0, 4], sizes = [8, 1], strides = [1, 1]} : vector<8x8xf32> to vector<8x1xf32>
    %21 = vector.broadcast %20 : vector<8x1xf32> to vector<8x8xf32>
    %22 = arith.mulf %21, %7 : vector<8x8xf32>
    %23 = vector.extract_strided_slice %7 {offsets = [0, 5], sizes = [8, 1], strides = [1, 1]} : vector<8x8xf32> to vector<8x1xf32>
    %24 = vector.broadcast %23 : vector<8x1xf32> to vector<8x8xf32>
    %25 = arith.mulf %24, %7 : vector<8x8xf32>
    %26 = vector.extract_strided_slice %7 {offsets = [0, 6], sizes = [8, 1], strides = [1, 1]} : vector<8x8xf32> to vector<8x1xf32>
    %27 = vector.broadcast %26 : vector<8x1xf32> to vector<8x8xf32>
    %28 = arith.mulf %27, %7 : vector<8x8xf32>
    %29 = vector.extract_strided_slice %7 {offsets = [0, 7], sizes = [8, 1], strides = [1, 1]} : vector<8x8xf32> to vector<8x1xf32>
    %30 = vector.broadcast %29 : vector<8x1xf32> to vector<8x8xf32>
    %31 = arith.mulf %30, %7 : vector<8x8xf32>
    %c0_1 = arith.constant 0 : index
    %c0_2 = arith.constant 0 : index
    %32 = vector.load %arg1[%c0_1, %c0_2] : memref<8x32xf32, #tpu.memory_space<vmem>>, vector<8x32xf32>
    %33 = tpu.concatenate %32, %10, %13, %16, %19, %22, %25, %28, %31 in 1 : vector<8x32xf32>, vector<8x8xf32>, vector<8x8xf32>, vector<8x8xf32>, vector<8x8xf32>, vector<8x8xf32>, vector<8x8xf32>, vector<8x8xf32>, vector<8x8xf32> -> vector<8x96xf32>
    %c0_3 = arith.constant 0 : index
    %c0_4 = arith.constant 0 : index
    %34 = vector.load %arg3[%c0_3, %c0_4] : memref<96x128xf32, #tpu.memory_space<vmem>>, vector<96x128xf32>
    %cst = arith.constant dense<0.000000e+00> : vector<8x128xf32>
    %35 = tpu.matmul %33, %34, %cst {dimension_numbers = #tpu.dot_dimension_numbers<[1], [0], [0], [1], [0, 0, 1, 1], [], []>} : vector<8x96xf32>, vector<96x128xf32>, vector<8x128xf32> -> vector<8x128xf32>
    %c0_5 = arith.constant 0 : index
    %c0_6 = arith.constant 0 : index
    %36 = vector.load %arg4[%c0_5, %c0_6] : memref<1x128xf32, #tpu.memory_space<vmem>>, vector<1x128xf32>
    %37 = vector.broadcast %36 : vector<1x128xf32> to vector<8x128xf32>
    %38 = arith.addf %35, %37 : vector<8x128xf32>
    %c0_7 = arith.constant 0 : index
    %c0_8 = arith.constant 0 : index
    %39 = vector.load %arg5[%c0_7, %c0_8] : memref<8x128xf32, #tpu.memory_space<vmem>>, vector<8x128xf32>
    tpu.vector_store %arg5[%c0_7, %c0_8], %38 {strides = array<i32>} : memref<8x128xf32, #tpu.memory_space<vmem>>, vector<8x128xf32>,
    return
  }
  func.func @transform_0(%arg0: i32) -> (i32, i32) {
    %c0_i32 = arith.constant 0 : i32
    %c0_i32_0 = arith.constant 0 : i32
    return %arg0, %c0_i32 : i32, i32
  }
  func.func @transform_1(%arg0: i32) -> (i32, i32) {
    %c0_i32 = arith.constant 0 : i32
    %c0_i32_0 = arith.constant 0 : i32
    return %arg0, %c0_i32 : i32, i32
  }
  func.func @transform_2(%arg0: i32) -> (i32, i32) {
    %c0_i32 = arith.constant 0 : i32
    %c0_i32_0 = arith.constant 0 : i32
    %c0_i32_1 = arith.constant 0 : i32
    return %c0_i32, %c0_i32_0 : i32, i32
  }
  func.func @transform_3(%arg0: i32) -> (i32, i32) {
    %c0_i32 = arith.constant 0 : i32
    %c0_i32_0 = arith.constant 0 : i32
    %c0_i32_1 = arith.constant 0 : i32
    return %c0_i32, %c0_i32_0 : i32, i32
  }
  func.func @transform_4(%arg0: i32) -> (i32, i32) {
    %c0_i32 = arith.constant 0 : i32
    %c0_i32_0 = arith.constant 0 : i32
    return %arg0, %c0_i32 : i32, i32
  }
}

</mosaic_0001>

<llo_original>
// kernel: tpu_custom_call.1
$region0: #{tpu_custom_call.1}
  #allocation0 [shape = 'u32[]', space=smem, size = 0x4, offset = 0x4, fixed_abs, tag = 'smem constant byte address 0x4 - core index']
  #allocation1 [shape = 'u32[144,128]{1,0:T(1,128)}', space=vmem, size = 0x12000, scoped, tag = 'internal scratch']
  %s0 = inlined_call_operand.hbm [shape: f32[8,32], index: 0, kind: input, shape index: {}]
  %s1 = inlined_call_operand.hbm [shape: f32[8,32], index: 1, kind: input, shape index: {}]
  %s2 = inlined_call_operand.hbm [shape: f32[96,128], index: 2, kind: input, shape index: {}]
  %s3 = inlined_call_operand.vmem [shape: f32[1,128], index: 3, kind: input, shape index: {}]
  %s4 = inlined_call_operand.hbm [shape: f32[8,128], index: 4, kind: output, shape index: {}]
  %s5 = sld [smem:[#allocation0]]
  $region38: #{tpu_custom_call.1} parent=0
    _
  %s7 = ssub.s32 1, %s5
  %s8 = scalar_select 0, %s7, %s5
  $region1: #{tpu_custom_call.1} parent=0
    #allocation2 [shape = 'u8[4096]{0}', space=vmem, size = 0x1000, scoped, tag = 'input window, operand 0, single buffered']
    #allocation3 [shape = 's32[1]{0}', space=sflag, size = 0x4, scoped, tag = 'scoped memory for tpu_custom_call.1']
    #allocation4 [shape = 's32[1]{0}', space=sflag, size = 0x4, scoped, tag = 'scoped memory for tpu_custom_call.1']
    #allocation5 [shape = 'u8[4096]{0}', space=vmem, size = 0x1000, scoped, tag = 'input window, operand 1, single buffered']
    #allocation6 [shape = 's32[1]{0}', space=sflag, size = 0x4, scoped, tag = 'scoped memory for tpu_custom_call.1']
    #allocation7 [shape = 'u8[49152]{0}', space=vmem, size = 0xc000, scoped, tag = 'input window, operand 2, single buffered']
    #allocation8 [shape = 'u8[4096]{0}', space=vmem, size = 0x1000, scoped, tag = 'output window, operand 0, single buffered']
    %9 = vsyncpa [#allocation3], 0
    %10 = vsyncpa [#allocation6], 0
    %11 = vsyncpa [#allocation4], 0
    // Predicated region
    $region2: #{tpu_custom_call.1} parent=1 // pred_check
      _
    $region3: #{tpu_custom_call.1} parent=1 // pred_check_branch
      %13 = sbr.rel (0) target = $region5
    $region4: #{tpu_custom_call.1} parent=1 // pred_region
      %s15 = ssub.s32 128, 128
      %16 = vsyncadd [#allocation3], %s15
      %s18 = sshll.u32 [#allocation2], 4
      %s19 = int_to_ptr.vmem [resolvable:$true] %s18
      %21 = dma.hbm_to_vmem [thread:$0]  %s0, 128, %s19, [#allocation3]
    $region5: #{tpu_custom_call.1} parent=1 // pred_fallthru
      _
    // Predicated region
    $region6: #{tpu_custom_call.1} parent=1 // pred_check
      _
    $region7: #{tpu_custom_call.1} parent=1 // pred_check_branch
      %23 = sbr.rel (0) target = $region9
    $region8: #{tpu_custom_call.1} parent=1 // pred_region
      %s25 = ssub.s32 128, 128
      %26 = vsyncadd [#allocation6], %s25
      %s28 = sshll.u32 [#allocation5], 4
      %s29 = int_to_ptr.vmem [resolvable:$true] %s28
      %31 = dma.hbm_to_vmem [thread:$0]  %s1, 128, %s29, [#allocation6]
    $region9: #{tpu_custom_call.1} parent=1 // pred_fallthru
      _
    // Predicated region
    $region10: #{tpu_custom_call.1} parent=1 // pred_check
      _
    $region11: #{tpu_custom_call.1} parent=1 // pred_check_branch
      %33 = sbr.rel (0) target = $region13
    $region12: #{tpu_custom_call.1} parent=1 // pred_region
      %s35 = ssub.s32 1536, 1536
      %36 = vsyncadd [#allocation6], %s35
      %s37 = sshll.u32 [#allocation7], 4
      %s38 = int_to_ptr.vmem [resolvable:$true] %s37
      %43 = dma.hbm_to_vmem [thread:$0]  %s2, 1536, %s38, [#allocation6], 128, 128, 8
    $region13: #{tpu_custom_call.1} parent=1 // pred_fallthru
      _
    // Predicated region
    $region14: #{tpu_custom_call.1} parent=1 // pred_check
      _
    $region15: #{tpu_custom_call.1} parent=1 // pred_check_branch
      %45 = sbr.rel (0) target = $region17
    $region16: #{tpu_custom_call.1} parent=1 // pred_region
      _
    $region17: #{tpu_custom_call.1} parent=1 // pred_fallthru
      _
    // Predicated region
    $region18: #{tpu_custom_call.1} parent=1 // pred_check
      _
    $region19: #{tpu_custom_call.1} parent=1 // pred_check_branch
      %47 = sbr.rel (0) target = $region21
    $region20: #{tpu_custom_call.1} parent=1 // pred_region
      %48 = dma.done [#allocation3], 128
    $region21: #{tpu_custom_call.1} parent=1 // pred_fallthru
      _
    // Predicated region
    $region22: #{tpu_custom_call.1} parent=1 // pred_check
      _
    $region23: #{tpu_custom_call.1} parent=1 // pred_check_branch
      %50 = sbr.rel (0) target = $region25
    $region24: #{tpu_custom_call.1} parent=1 // pred_region
      %51 = dma.done [#allocation6], 128
    $region25: #{tpu_custom_call.1} parent=1 // pred_fallthru
      _
    // Predicated region
    $region26: #{tpu_custom_call.1} parent=1 // pred_check
      _
    $region27: #{tpu_custom_call.1} parent=1 // pred_check_branch
      %53 = sbr.rel (0) target = $region29
    $region28: #{tpu_custom_call.1} parent=1 // pred_region
      %54 = dma.done [#allocation6], 1536
    $region29: #{tpu_custom_call.1} parent=1 // pred_fallthru
      _
    %v55 = vld [vmem:[#allocation5] sm:$0xff]
    %57 = vrot.lane.b32.xlu0 %v55, 120
    %v58 = vpop.permute.xlu0 %57
    %v60 = vadd.f32 %v55, %v58
    %61 = vrot.lane.b32.xlu0 %v55, 112
    %v62 = vpop.permute.xlu0 %61
    %v64 = vadd.f32 %v60, %v62
    %65 = vrot.lane.b32.xlu0 %v55, 104
    %v66 = vpop.permute.xlu0 %65
    %v68 = vadd.f32 %v64, %v66
    %70 = vset.pattern.permute.xlu0 0
    %71 = vperm.xlu0 %70, %v68
    %v72 = vpop.permute.xlu0 %71
    %v74 = vmul.f32 %v72, %v68
    %75 = vset.pattern.permute.xlu0 1
    %76 = vperm.xlu0 %75, %v68
    %v77 = vpop.permute.xlu0 %76
    %v79 = vmul.f32 %v77, %v68
    %80 = vset.pattern.permute.xlu0 2
    %81 = vperm.xlu0 %80, %v68
    %v82 = vpop.permute.xlu0 %81
    %v84 = vmul.f32 %v82, %v68
    %85 = vset.pattern.permute.xlu0 3
    %86 = vperm.xlu0 %85, %v68
    %v87 = vpop.permute.xlu0 %86
    %v89 = vmul.f32 %v87, %v68
    %90 = vset.pattern.permute.xlu0 4
    %91 = vperm.xlu0 %90, %v68
    %v92 = vpop.permute.xlu0 %91
    %v94 = vmul.f32 %v92, %v68
    %95 = vset.pattern.permute.xlu0 5
    %96 = vperm.xlu0 %95, %v68
    %v97 = vpop.permute.xlu0 %96
    %v99 = vmul.f32 %v97, %v68
    %100 = vset.pattern.permute.xlu0 6
    %101 = vperm.xlu0 %100, %v68
    %v102 = vpop.permute.xlu0 %101
    %v104 = vmul.f32 %v102, %v68
    %105 = vset.pattern.permute.xlu0 7
    %106 = vperm.xlu0 %105, %v68
    %v107 = vpop.permute.xlu0 %106
    %v109 = vmul.f32 %v107, %v68
    %v110 = vld [vmem:[#allocation2] sm:$0xff]
    %112 = vrot.lane.b32.xlu0 %v74, 32
    %v113 = vpop.permute.xlu0 %112
    %116 = vrot.lane.b32.xlu0 %v79, 40
    %v117 = vpop.permute.xlu0 %116
    %120 = vrot.lane.b32.xlu0 %v84, 48
    %v121 = vpop.permute.xlu0 %120
    %124 = vrot.lane.b32.xlu0 %v89, 56
    %v125 = vpop.permute.xlu0 %124
    %128 = vrot.lane.b32.xlu0 %v94, 64
    %v129 = vpop.permute.xlu0 %128
    %132 = vrot.lane.b32.xlu0 %v99, 72
    %v133 = vpop.permute.xlu0 %132
    %136 = vrot.lane.b32.xlu0 %v104, 80
    %v137 = vpop.permute.xlu0 %136
    %140 = vrot.lane.b32.xlu0 %v109, 88
    %v141 = vpop.permute.xlu0 %140
    %vm143 = vcmask 261120
    %v144 = vsel %vm143, %v110, %v113
    %vm145 = vcmask 326656
    %v146 = vsel %vm145, %v144, %v117
    %vm147 = vcmask 392192
    %v148 = vsel %vm147, %v146, %v121
    %vm149 = vcmask 457728
    %v150 = vsel %vm149, %v148, %v125
    %vm151 = vcmask 523264
    %v152 = vsel %vm151, %v150, %v129
    %vm153 = vcmask 588800
    %v154 = vsel %vm153, %v152, %v133
    %vm155 = vcmask 654336
    %v156 = vsel %vm155, %v154, %v137
    %vm157 = vcmask 719872
    %v158 = vsel %vm157, %v156, %v141
    %v159 = vld [vmem:[#allocation7] sm:$0xff]
    %v160 = vld [vmem:[#allocation7 + $0x8] sm:$0xff]
    %v161 = vld [vmem:[#allocation7 + $0x10] sm:$0xff]
    %v162 = vld [vmem:[#allocation7 + $0x18] sm:$0xff]
    %v163 = vld [vmem:[#allocation7 + $0x20] sm:$0xff]
    %v164 = vld [vmem:[#allocation7 + $0x28] sm:$0xff]
    %v165 = vld [vmem:[#allocation7 + $0x30] sm:$0xff]
    %v166 = vld [vmem:[#allocation7 + $0x38] sm:$0xff]
    %v167 = vld [vmem:[#allocation7 + $0x40] sm:$0xff]
    %v168 = vld [vmem:[#allocation7 + $0x48] sm:$0xff]
    %v169 = vld [vmem:[#allocation7 + $0x50] sm:$0xff]
    %v170 = vld [vmem:[#allocation7 + $0x58] sm:$0xff]
    %v171 = vld [vmem:[%s3] sm:$0x1]
    %v173 = vlaneseq
    %v174 = vshrl.u32 %v173, 7
    %v175 = vsub.s32 0, %v174
    %v176 = vrot.slane %v171, %v175
    %vm178 = vcmask 785408
    %v180 = vsel %vm178, %v158, 0
    %182 = vmatprep.subr.mxu0 0.0
    %183 = vmatpush1.msra.mxu0 0.0
    %184 = vmatprep.subr.mxu0 0.0
    %185 = vmatpush1.msra.mxu0 0.0
    %186 = vmatprep.subr.mxu0 0.0
    %187 = vmatpush1.msra.mxu0 0.0
    %188 = vmatprep.subr.mxu0 0.0
    %189 = vmatpush1.msra.mxu0 0.0
    %190 = vmatprep.subr.mxu0 0.0
    %191 = vmatpush1.msra.mxu0 %v170
    %192 = vmatprep.subr.mxu0 0.0
    %193 = vmatpush1.msra.mxu0 %v169
    %194 = vmatprep.subr.mxu0 0.0
    %195 = vmatpush1.msra.mxu0 %v168
    %196 = vmatprep.subr.mxu0 0.0
    %197 = vmatpush1.msra.mxu0 %v167
    %198 = vmatprep.subr.mxu0 0.0
    %199 = vmatpush1.msra.mxu0 %v166
    %200 = vmatprep.subr.mxu0 0.0
    %201 = vmatpush1.msra.mxu0 %v165
    %202 = vmatprep.subr.mxu0 0.0
    %203 = vmatpush1.msra.mxu0 %v164
    %204 = vmatprep.subr.mxu0 0.0
    %205 = vmatpush1.msra.mxu0 %v163
    %206 = vmatprep.subr.mxu0 0.0
    %207 = vmatpush1.msra.mxu0 %v162
    %208 = vmatprep.subr.mxu0 0.0
    %209 = vmatpush1.msra.mxu0 %v161
    %210 = vmatprep.subr.mxu0 0.0
    %211 = vmatpush1.msra.mxu0 %v160
    %212 = vmatprep.subr.mxu0 0.0
    %213 = vmatpush1.msra.mxu0 %v159
    %214 = vmatprep.subr.mxu0 0.0
    %215 = vmatpush2.msra.mxu0 0.0
    %216 = vmatprep.subr.mxu0 0.0
    %217 = vmatpush2.msra.mxu0 0.0
    %218 = vmatprep.subr.mxu0 0.0
    %219 = vmatpush2.msra.mxu0 0.0
    %220 = vmatprep.subr.mxu0 0.0
    %221 = vmatpush2.msra.mxu0 0.0
    %222 = vmatprep.subr.mxu0 0.0
    %223 = vmatpush2.msra.mxu0 0.0
    %224 = vmatprep.subr.mxu0 0.0
    %225 = vmatpush2.msra.mxu0 0.0
    %226 = vmatprep.subr.mxu0 0.0
    %227 = vmatpush2.msra.mxu0 0.0
    %228 = vmatprep.subr.mxu0 0.0
    %229 = vmatpush2.msra.mxu0 0.0
    %230 = vmatprep.subr.mxu0 0.0
    %231 = vmatpush2.msra.mxu0 0.0
    %232 = vmatprep.subr.mxu0 0.0
    %233 = vmatpush2.msra.mxu0 0.0
    %234 = vmatprep.subr.mxu0 0.0
    %235 = vmatpush2.msra.mxu0 0.0
    %236 = vmatprep.subr.mxu0 0.0
    %237 = vmatpush2.msra.mxu0 0.0
    %238 = vmatprep.subr.mxu0 0.0
    %239 = vmatpush2.msra.mxu0 0.0
    %240 = vmatprep.subr.mxu0 0.0
    %241 = vmatpush2.msra.mxu0 0.0
    %242 = vmatprep.subr.mxu0 0.0
    %243 = vmatpush2.msra.mxu0 0.0
    %244 = vmatprep.subr.mxu0 0.0
    %245 = vmatpush2.msra.mxu0 0.0
    %246 = vmatprep.mubr.f32.mxu0 0.0
    %247 = vmatmul.mubr.f32.gmra.mxu0 %v180
    %v248 = vpop.f32.mrf.mxu0
    %v249 = vadd.f32 %v176, %v248
    %v250 = vpop.f32.mrf.mxu0
    %251 = vdwg.mxu0
    %252 = vst [vmem:[#allocation8] sm:$0xff] %v249
    // Predicated region
    $region30: #{tpu_custom_call.1} parent=1 // pred_check
      _
    $region31: #{tpu_custom_call.1} parent=1 // pred_check_branch
      %254 = sbr.rel (0) target = $region33
    $region32: #{tpu_custom_call.1} parent=1 // pred_region
      %s256 = ssub.s32 128, 128
      %257 = vsyncadd [#allocation4], %s256
      %s259 = sshll.u32 [#allocation8], 4
      %s260 = int_to_ptr.vmem [resolvable:$true] %s259
      %262 = dma.vmem_to_hbm [thread:$0]  %s260, 128, %s4, [#allocation4]
    $region33: #{tpu_custom_call.1} parent=1 // pred_fallthru
      _
    // Predicated region
    $region34: #{tpu_custom_call.1} parent=1 // pred_check
      _
    $region35: #{tpu_custom_call.1} parent=1 // pred_check_branch
      %264 = sbr.rel (0) target = $region37
    $region36: #{tpu_custom_call.1} parent=1 // pred_region
      %265 = dma.done [#allocation4], 128
    $region37: #{tpu_custom_call.1} parent=1 // pred_fallthru
      _
    %266 = vsyncpa [#allocation3], 1
    %267 = vsyncpa [#allocation6], 1
    %268 = vsyncpa [#allocation4], 1

</llo_original>
